<compile_context>
chip_gen: v6e
topology: v6e:2x2x1
jax: 0.10.0
libtpu: 0.0.40
codegen_flags: <defaults>
</compile_context>

<pallas_src>
import functools

import jax
import jax.numpy as jnp
from jax.experimental import pallas as pl
from jax.experimental.pallas import tpu as pltpu

INPUT_SIZE = 3
OUTPUT_SIZE = 1

# Max batch columns per block.  Per-step double-buffered VMEM footprint is
# ~128 * TILE_B bytes (x (3,T) sublane-pads to (8,T) = 32*T B, out (1,T) pads
# to (8,T) = 32*T B, x2 for double buffering) -> 64K columns ~= 8 MiB, safely
# under the scoped-VMEM default on every generation (16 MiB v5e, 32 MiB
# v6e/v7x) while giving ~1 us of HBM DMA per step to hide pipeline overhead.
MAX_TILE_B = 64 * 1024


def _round_up(n: int, m: int) -> int:
    return ((n + m - 1) // m) * m


def linear_kernel(x_ref, w_ref, b_ref, o_ref):
    """One lane-dense batch tile of y = x @ W.T + b.

    x_ref: (IN, TILE_B)   VMEM   batch on the lane axis
    w_ref: (OUT * IN,)    SMEM   row-major nn.Linear weight, read as scalars
    b_ref: (OUT,)         SMEM   bias scalars
    o_ref: (OUT, TILE_B)  VMEM   lane-dense output
    """
    n_in, tile_b = x_ref.shape
    n_out = o_ref.shape[0]
    for o in range(n_out):                        # OUT = 1: statically unrolled
        acc = jnp.zeros((1, tile_b), dtype=jnp.float32)
        for k in range(n_in):                     # IN = 3: three VPU FMAs
            acc = acc + w_ref[o * n_in + k] * x_ref[pl.ds(k, 1), :]
        o_ref[pl.ds(o, 1), :] = (acc + b_ref[o]).astype(o_ref.dtype)


@functools.partial(jax.jit, static_argnames=())
def single_layer_nn(x, weight, bias):
    """Forward pass of SingleLayerNN (nn.Linear): y = x @ weight.T + bias.

    x:      (B, IN)   float32
    weight: (OUT, IN) float32  (PyTorch convention)
    bias:   (OUT,)    float32
    returns (B, OUT)  float32

    Run under jax.jit (decorated) so the feature-major relayout (transpose +
    pad) and the output slice/transpose fuse instead of dispatching as
    separate HBM passes around the memory-bound kernel.
    """
    B, IN = x.shape
    OUT = weight.shape[0]

    # Pad batch only to the lane granularity (128); ragged last blocks are
    # handled by the cdiv grid, so large tiles never force large padding.
    b_pad = _round_up(B, 128)

    # Tile: as large as MAX_TILE_B, but split into >=2 steps when possible so
    # the "parallel" batch axis gives v7x's second TensorCore work.
    tile_b = min(MAX_TILE_B, _round_up(pl.cdiv(b_pad, 2), 128))
    grid = (pl.cdiv(b_pad, tile_b),)

    x_t = jnp.pad(x.T, ((0, 0), (0, b_pad - B)))   # (IN, b_pad), fused under jit
    w_flat = weight.reshape(-1)                    # (OUT*IN,) row-major scalars

    out_t = pl.pallas_call(
        linear_kernel,
        out_shape=jax.ShapeDtypeStruct((OUT, b_pad), x.dtype),
        grid=grid,
        in_specs=[
            pl.BlockSpec((IN, tile_b), lambda i: (0, i)),        # x tile (VMEM)
            pl.BlockSpec(memory_space=pltpu.MemorySpace.SMEM),   # weight scalars
            pl.BlockSpec(memory_space=pltpu.MemorySpace.SMEM),   # bias scalars
        ],
        out_specs=pl.BlockSpec((OUT, tile_b), lambda i: (0, i)),
        compiler_params=pltpu.CompilerParams(
            dimension_semantics=("parallel",),     # batch axis -> both TCs on v7x
            vmem_limit_bytes=32 * 1024 * 1024,     # headroom for double buffers
        ),
        cost_estimate=pl.CostEstimate(
            flops=2 * IN * OUT * b_pad,            # ~6 flops per column
            bytes_accessed=(IN + OUT) * 4 * b_pad,  # ~16 B per column
            transcendentals=0,
        ),
    )(x_t, w_flat, bias)

    # Padded / ragged-tail columns hold junk (bias-only or undefined); this
    # slice (fused under jit) discards them.
    return out_t[:, :B].T                          # (B, OUT)


if __name__ == "__main__":
    key = jax.random.PRNGKey(0)
    kx, kw, kb = jax.random.split(key, 3)

    B = 8
    x = jax.random.normal(kx, (B, INPUT_SIZE), dtype=jnp.float32)

    # Deterministic parameter init matching nn.Linear's default
    # (uniform in [-1/sqrt(fan_in), 1/sqrt(fan_in)]).
    bound = 1.0 / (INPUT_SIZE ** 0.5)
    weight = jax.random.uniform(
        kw, (OUTPUT_SIZE, INPUT_SIZE), minval=-bound, maxval=bound, dtype=jnp.float32
    )
    bias = jax.random.uniform(
        kb, (OUTPUT_SIZE,), minval=-bound, maxval=bound, dtype=jnp.float32
    )

    out = single_layer_nn(x, weight, bias)
    jax.block_until_ready(out)

    # Sanity check against plain JAX reference.
    ref = x @ weight.T + bias
    assert out.shape == (B, OUTPUT_SIZE)
    assert jnp.allclose(out, ref, atol=1e-5, rtol=1e-5)

    print("KERNEL_OK")
</pallas_src>

<mosaic_0001>
module attributes {stable_mosaic.version = 11 : i64} {
  func.func @linear_kernel(%arg0: i32, %arg1: memref<3x128xf32, #tpu.memory_space<vmem>>, %arg2: memref<3xf32, #tpu.memory_space<smem>>, %arg3: memref<1xf32, #tpu.memory_space<smem>>, %arg4: memref<1x128xf32, #tpu.memory_space<vmem>>) attributes {dimension_semantics = [#tpu.dimension_semantics<parallel>], iteration_bounds = array<i64: 1>, scalar_prefetch = 0 : i64, scratch_operands = 0 : i64, tpu.core_type = #tpu.core_type<tc>, window_params = [{transform_indices = @transform_0, window_bounds = array<i64: 3, 128>}, {transform_indices = @transform_1, window_bounds = array<i64: 3>}, {transform_indices = @transform_2, window_bounds = array<i64: 1>}, {transform_indices = @transform_3, window_bounds = array<i64: 1, 128>}]} {
    %cst = arith.constant 0.000000e+00 : f32
    %0 = vector.broadcast %cst : f32 to vector<1x128xf32>
    %c0 = arith.constant 0 : index
    %1 = memref.load %arg2[%c0] : memref<3xf32, #tpu.memory_space<smem>>
    %c0_0 = arith.constant 0 : index
    %c0_1 = arith.constant 0 : index
    %2 = vector.load %arg1[%c0_0, %c0_1] : memref<3x128xf32, #tpu.memory_space<vmem>>, vector<1x128xf32>
    %3 = vector.broadcast %1 : f32 to vector<1x128xf32>
    %4 = arith.mulf %3, %2 : vector<1x128xf32>
    %5 = arith.addf %0, %4 : vector<1x128xf32>
    %c1 = arith.constant 1 : index
    %6 = memref.load %arg2[%c1] : memref<3xf32, #tpu.memory_space<smem>>
    %c1_2 = arith.constant 1 : index
    %c0_3 = arith.constant 0 : index
    %7 = vector.load %arg1[%c1_2, %c0_3] : memref<3x128xf32, #tpu.memory_space<vmem>>, vector<1x128xf32>
    %8 = vector.broadcast %6 : f32 to vector<1x128xf32>
    %9 = arith.mulf %8, %7 : vector<1x128xf32>
    %10 = arith.addf %5, %9 : vector<1x128xf32>
    %c2 = arith.constant 2 : index
    %11 = memref.load %arg2[%c2] : memref<3xf32, #tpu.memory_space<smem>>
    %c2_4 = arith.constant 2 : index
    %c0_5 = arith.constant 0 : index
    %12 = vector.load %arg1[%c2_4, %c0_5] : memref<3x128xf32, #tpu.memory_space<vmem>>, vector<1x128xf32>
    %13 = vector.broadcast %11 : f32 to vector<1x128xf32>
    %14 = arith.mulf %13, %12 : vector<1x128xf32>
    %15 = arith.addf %10, %14 : vector<1x128xf32>
    %c0_6 = arith.constant 0 : index
    %16 = memref.load %arg3[%c0_6] : memref<1xf32, #tpu.memory_space<smem>>
    %17 = vector.broadcast %16 : f32 to vector<1x128xf32>
    %18 = arith.addf %15, %17 : vector<1x128xf32>
    %c0_7 = arith.constant 0 : index
    %c0_8 = arith.constant 0 : index
    %19 = vector.load %arg4[%c0_7, %c0_8] : memref<1x128xf32, #tpu.memory_space<vmem>>, vector<1x128xf32>
    tpu.vector_store %arg4[%c0_7, %c0_8], %18 {strides = array<i32>} : memref<1x128xf32, #tpu.memory_space<vmem>>, vector<1x128xf32>,
    return
  }
  func.func @transform_0(%arg0: i32) -> (i32, i32) {
    %c0_i32 = arith.constant 0 : i32
    %c0_i32_0 = arith.constant 0 : i32
    return %c0_i32, %arg0 : i32, i32
  }
  func.func @transform_1(%arg0: i32) -> i32 {
    %c0_i32 = arith.constant 0 : i32
    %c0_i32_0 = arith.constant 0 : i32
    return %c0_i32 : i32
  }
  func.func @transform_2(%arg0: i32) -> i32 {
    %c0_i32 = arith.constant 0 : i32
    %c0_i32_0 = arith.constant 0 : i32
    return %c0_i32 : i32
  }
  func.func @transform_3(%arg0: i32) -> (i32, i32) {
    %c0_i32 = arith.constant 0 : i32
    %c0_i32_0 = arith.constant 0 : i32
    return %c0_i32, %arg0 : i32, i32
  }
}

</mosaic_0001>

<llo_original>
// kernel: single_layer_nn.1
$region0: #{single_layer_nn.1}
  #allocation0 [shape = 'u32[]', space=smem, size = 0x4, offset = 0x4, fixed_abs, tag = 'smem constant byte address 0x4 - core index']
  #allocation1 [shape = 'u32[144,128]{1,0:T(1,128)}', space=vmem, size = 0x12000, scoped, tag = 'internal scratch']
  #allocation2 [shape = 'f32[1]{0:T(128)S(6)}', space=smem, size = 0x200, scoped, tag = 'scoped memory for single_layer_nn.1']
  %s0 = inlined_call_operand.vmem [shape: f32[3,128], index: 0, kind: input, shape index: {}]
  %s1 = inlined_call_operand.vmem [shape: f32[3], index: 1, kind: input, shape index: {}]
  %s2 = inlined_call_operand.<no memory space> [shape: f32[1], index: 2, kind: input, shape index: {}]
  %s3 = inlined_call_operand.vmem [shape: f32[1,128], index: 3, kind: output, shape index: {}]
  %s4 = sld [smem:[#allocation0]]
  $region26: #{single_layer_nn.1} parent=0
    _
  %s6 = ssub.s32 1, %s4
  %s7 = scalar_select 0, %s6, %s4
  %8 = sst [smem:[#allocation2]] %s2
  $region1: #{single_layer_nn.1} parent=0
    #allocation3 [shape = 'u8[512]{0}', space=smem, size = 0x200, scoped, tag = 'input window, operand 1, single buffered']
    #allocation4 [shape = 's32[1]{0}', space=sflag, size = 0x4, scoped, tag = 'scoped memory for single_layer_nn.1']
    %9 = vsyncpa [#allocation4], 0
    // Predicated region
    $region2: #{single_layer_nn.1} parent=1 // pred_check
      _
    $region3: #{single_layer_nn.1} parent=1 // pred_check_branch
      %11 = sbr.rel (0) target = $region5
    $region4: #{single_layer_nn.1} parent=1 // pred_region
      _
    $region5: #{single_layer_nn.1} parent=1 // pred_fallthru
      _
    // Predicated region
    $region6: #{single_layer_nn.1} parent=1 // pred_check
      _
    $region7: #{single_layer_nn.1} parent=1 // pred_check_branch
      %13 = sbr.rel (0) target = $region9
    $region8: #{single_layer_nn.1} parent=1 // pred_region
      %s15 = ssub.s32 16, 16
      %16 = vsyncadd [#allocation4], %s15
      %s18 = sshll.u32 %s1, 4
      %s19 = int_to_ptr.vmem [resolvable:$true] %s18
      %21 = dma.vmem_to_smem %s19, 16, [#allocation3], [#allocation4]
    $region9: #{single_layer_nn.1} parent=1 // pred_fallthru
      _
    // Predicated region
    $region10: #{single_layer_nn.1} parent=1 // pred_check
      _
    $region11: #{single_layer_nn.1} parent=1 // pred_check_branch
      %23 = sbr.rel (0) target = $region13
    $region12: #{single_layer_nn.1} parent=1 // pred_region
      _
    $region13: #{single_layer_nn.1} parent=1 // pred_fallthru
      _
    // Predicated region
    $region14: #{single_layer_nn.1} parent=1 // pred_check
      _
    $region15: #{single_layer_nn.1} parent=1 // pred_check_branch
      %25 = sbr.rel (0) target = $region17
    $region16: #{single_layer_nn.1} parent=1 // pred_region
      %26 = dma.done [#allocation4], 16
    $region17: #{single_layer_nn.1} parent=1 // pred_fallthru
      _
    %27 = sfence
    %s28 = sld [smem:[#allocation3]]
    %v29 = vld [vmem:[%s0] sm:$0x1]
    %v30 = vstv %s28
    %v31 = vmul.f32 %v30, %v29
    %v32 = vadd.f32 %v31, 0.0
    %s33 = sld [smem:[#allocation3 + $0x1]]
    %v34 = vld [vmem:[%s0 + $0x1] sm:$0x1]
    %v35 = vstv %s33
    %v36 = vmul.f32 %v35, %v34
    %v37 = vadd.f32 %v32, %v36
    %s38 = sld [smem:[#allocation3 + $0x2]]
    %v39 = vld [vmem:[%s0 + $0x2] sm:$0x1]
    %v40 = vstv %s38
    %v41 = vmul.f32 %v40, %v39
    %v42 = vadd.f32 %v37, %v41
    %s43 = sld [smem:[#allocation2]]
    %v44 = vstv %s43
    %v45 = vadd.f32 %v42, %v44
    %46 = vst [vmem:[%s3] sm:$0x1] %v45
    // Predicated region
    $region18: #{single_layer_nn.1} parent=1 // pred_check
      _
    $region19: #{single_layer_nn.1} parent=1 // pred_check_branch
      %48 = sbr.rel (0) target = $region21
    $region20: #{single_layer_nn.1} parent=1 // pred_region
      _
    $region21: #{single_layer_nn.1} parent=1 // pred_fallthru
      _
    // Predicated region
    $region22: #{single_layer_nn.1} parent=1 // pred_check
      _
    $region23: #{single_layer_nn.1} parent=1 // pred_check_branch
      %50 = sbr.rel (0) target = $region25
    $region24: #{single_layer_nn.1} parent=1 // pred_region
      _
    $region25: #{single_layer_nn.1} parent=1 // pred_fallthru
      _
    %51 = vsyncpa [#allocation4], 1

</llo_original>
